<compile_context>
chip_gen: v6e
topology: v6e:2x2x1
jax: 0.10.0
libtpu: 0.0.40
codegen_flags: <defaults>
</compile_context>

<pallas_src>
import jax
import jax.numpy as jnp
from jax import lax
from jax.experimental import pallas as pl
from jax.experimental.pallas import tpu as pltpu


def _stem_matmul_kernel(p_ref, w_ref, b_ref, o_ref):
    """One batch tile per grid step.

    p_ref: (Bt, Kp, HW)   im2col patches, HW lane-dense
    w_ref: (Cout, Kp)     conv weights as a matrix (K zero-padded to Kp)
    b_ref: (Cout, 1)      bias column
    o_ref: (Bt, Cout, HW) output in NCHW-flattened layout
    """
    bt = p_ref.shape[0]
    w = w_ref[...]
    b = b_ref[...]
    # Static unroll over the (small) batch tile: one MXU matmul per image with
    # M = Cout, K = Kp, N = H*W lane-dense; bias add fused into the store.
    for i in range(bt):
        acc = lax.dot_general(
            w, p_ref[i],
            dimension_numbers=(((1,), (0,)), ((), ())),
            preferred_element_type=jnp.float32,
        )
        o_ref[i] = (acc + b).astype(o_ref.dtype)


def _pick_batch_tile(n, per_image_bytes, budget_bytes=4 << 20, max_tile=8):
    """Largest divisor of n that fits the VMEM budget, is <= max_tile, and leaves
    at least 2 grid blocks when n >= 2 (keeps both v7x TensorCores busy)."""
    cap = max(1, min(max_tile, budget_bytes // max(per_image_bytes, 1)))
    best = 1
    for d in range(1, n + 1):
        if n % d != 0 or d > cap:
            continue
        if n >= 2 and (n // d) < 2:
            continue
        best = max(best, d)
    return best


@jax.jit
def network_stem_forward(x_nchw, weight, bias):
    """x_nchw: (N, 3, H, W); weight: (Cout, 3, 3, 3) [OIHW]; bias: (Cout,)."""
    N, Cin, H, W = x_nchw.shape
    Cout, _, KH, KW = weight.shape
    HW = H * W
    K = KH * KW * Cin                      # 27
    Kp = ((K + 7) // 8) * 8                # 32: sublane-aligned contraction dim

    # --- XLA glue: zero pad + im2col, row order r = (kh*KW + kw)*Cin + cin ---
    xp = jnp.pad(x_nchw, ((0, 0), (0, 0), (1, 1), (1, 1)))
    slabs = [xp[:, :, kh:kh + H, kw:kw + W]                    # each (N, Cin, H, W)
             for kh in range(KH) for kw in range(KW)]
    patches = jnp.stack(slabs, axis=1).reshape(N, K, HW)       # (N, 27, H*W)
    patches = jnp.pad(patches, ((0, 0), (0, Kp - K), (0, 0)))  # (N, 32, H*W)

    # OIHW -> (Cout, kh, kw, cin) -> (Cout, 27) -> zero pad K to Kp.
    w_mat = jnp.transpose(weight, (0, 2, 3, 1)).reshape(Cout, K)
    w_mat = jnp.pad(w_mat, ((0, 0), (0, Kp - K)))
    b_col = bias.reshape(Cout, 1)

    bt = _pick_batch_tile(
        N, per_image_bytes=(Kp + Cout) * HW * x_nchw.dtype.itemsize)
    grid = (N // bt,)

    out_flat = pl.pallas_call(
        _stem_matmul_kernel,
        out_shape=jax.ShapeDtypeStruct((N, Cout, HW), x_nchw.dtype),
        grid_spec=pltpu.PrefetchScalarGridSpec(
            num_scalar_prefetch=0,
            grid=grid,
            in_specs=[
                pl.BlockSpec((bt, Kp, HW), lambda n: (n, 0, 0)),
                pl.BlockSpec((Cout, Kp), lambda n: (0, 0)),
                pl.BlockSpec((Cout, 1), lambda n: (0, 0)),
            ],
            out_specs=pl.BlockSpec((bt, Cout, HW), lambda n: (n, 0, 0)),
        ),
        compiler_params=pltpu.CompilerParams(
            dimension_semantics=("parallel",),
            vmem_limit_bytes=32 * 1024 * 1024,
        ),
    )(patches, w_mat, b_col)

    # Free row-major reshape to the PyTorch NCHW output convention (no transpose).
    return out_flat.reshape(N, Cout, H, W)


if __name__ == "__main__":
    key = jax.random.PRNGKey(0)
    k_x, k_w, k_b = jax.random.split(key, 3)

    N, Cin, H, W = 2, 3, 16, 16
    Cout = 8

    x = jax.random.normal(k_x, (N, Cin, H, W), dtype=jnp.float32)
    # Deterministic synthetic parameters (shapes from nn.Conv2d(3, cout, 3, 1, 1)).
    weight = jax.random.normal(k_w, (Cout, Cin, 3, 3), dtype=jnp.float32) * 0.1
    bias = jax.random.normal(k_b, (Cout,), dtype=jnp.float32) * 0.1

    out = network_stem_forward(x, weight, bias)
    out = jax.block_until_ready(out)

    # Sanity check against XLA's native conv (same semantics as F.conv2d).
    ref = lax.conv_general_dilated(
        x, weight, window_strides=(1, 1), padding=((1, 1), (1, 1)),
        dimension_numbers=("NCHW", "OIHW", "NCHW"),
    ) + bias[None, :, None, None]
    assert out.shape == (N, Cout, H, W)
    assert jnp.allclose(out, ref, atol=1e-4, rtol=1e-4)

    print("KERNEL_OK")
</pallas_src>

<mosaic_0001>
module attributes {stable_mosaic.version = 11 : i64} {
  func.func @_stem_matmul_kernel(%arg0: i32, %arg1: memref<1x32x256xf32, #tpu.memory_space<vmem>>, %arg2: memref<8x32xf32, #tpu.memory_space<vmem>>, %arg3: memref<8x1xf32, #tpu.memory_space<vmem>>, %arg4: memref<1x8x256xf32, #tpu.memory_space<vmem>>) attributes {dimension_semantics = [#tpu.dimension_semantics<parallel>], iteration_bounds = array<i64: 2>, scalar_prefetch = 0 : i64, scratch_operands = 0 : i64, tpu.core_type = #tpu.core_type<tc>, window_params = [{transform_indices = @transform_0, window_bounds = array<i64: 1, 32, 256>}, {pipeline_mode = #tpu.pipeline_mode<synchronous>, transform_indices = @transform_1, window_bounds = array<i64: 8, 32>}, {pipeline_mode = #tpu.pipeline_mode<synchronous>, transform_indices = @transform_2, window_bounds = array<i64: 8, 1>}, {transform_indices = @transform_3, window_bounds = array<i64: 1, 8, 256>}]} {
    %c0 = arith.constant 0 : index
    %c0_0 = arith.constant 0 : index
    %0 = vector.load %arg2[%c0, %c0_0] : memref<8x32xf32, #tpu.memory_space<vmem>>, vector<8x32xf32>
    %c0_1 = arith.constant 0 : index
    %c0_2 = arith.constant 0 : index
    %1 = vector.load %arg3[%c0_1, %c0_2] : memref<8x1xf32, #tpu.memory_space<vmem>>, vector<8x1xf32>
    %c0_3 = arith.constant 0 : index
    %c0_4 = arith.constant 0 : index
    %c0_5 = arith.constant 0 : index
    %2 = vector.load %arg1[%c0_3, %c0_4, %c0_5] : memref<1x32x256xf32, #tpu.memory_space<vmem>>, vector<1x32x256xf32>
    %3 = vector.shape_cast %2 : vector<1x32x256xf32> to vector<32x256xf32>
    %cst = arith.constant dense<0.000000e+00> : vector<8x256xf32>
    %4 = tpu.matmul %0, %3, %cst {dimension_numbers = #tpu.dot_dimension_numbers<[1], [0], [0], [1], [0, 0, 1, 1], [], []>} : vector<8x32xf32>, vector<32x256xf32>, vector<8x256xf32> -> vector<8x256xf32>
    %5 = vector.broadcast %1 : vector<8x1xf32> to vector<8x256xf32>
    %6 = arith.addf %4, %5 : vector<8x256xf32>
    %c0_6 = arith.constant 0 : index
    %c0_7 = arith.constant 0 : index
    %c0_8 = arith.constant 0 : index
    %7 = vector.load %arg4[%c0_6, %c0_7, %c0_8] : memref<1x8x256xf32, #tpu.memory_space<vmem>>, vector<1x8x256xf32>
    %8 = vector.shape_cast %7 : vector<1x8x256xf32> to vector<8x256xf32>
    %9 = vector.shape_cast %6 : vector<8x256xf32> to vector<1x8x256xf32>
    tpu.vector_store %arg4[%c0_6, %c0_7, %c0_8], %9 {strides = array<i32>} : memref<1x8x256xf32, #tpu.memory_space<vmem>>, vector<1x8x256xf32>,
    return
  }
  func.func @transform_0(%arg0: i32) -> (i32, i32, i32) {
    %c0_i32 = arith.constant 0 : i32
    %c0_i32_0 = arith.constant 0 : i32
    %c0_i32_1 = arith.constant 0 : i32
    return %arg0, %c0_i32, %c0_i32_0 : i32, i32, i32
  }
  func.func @transform_1(%arg0: i32) -> (i32, i32) {
    %c0_i32 = arith.constant 0 : i32
    %c0_i32_0 = arith.constant 0 : i32
    %c0_i32_1 = arith.constant 0 : i32
    return %c0_i32, %c0_i32_0 : i32, i32
  }
  func.func @transform_2(%arg0: i32) -> (i32, i32) {
    %c0_i32 = arith.constant 0 : i32
    %c0_i32_0 = arith.constant 0 : i32
    %c0_i32_1 = arith.constant 0 : i32
    return %c0_i32, %c0_i32_0 : i32, i32
  }
  func.func @transform_3(%arg0: i32) -> (i32, i32, i32) {
    %c0_i32 = arith.constant 0 : i32
    %c0_i32_0 = arith.constant 0 : i32
    %c0_i32_1 = arith.constant 0 : i32
    return %arg0, %c0_i32, %c0_i32_0 : i32, i32, i32
  }
}

</mosaic_0001>

<llo_original>
// kernel: network_stem_forward.1
$region0: #{network_stem_forward.1}
  #allocation0 [shape = 'u32[]', space=smem, size = 0x4, offset = 0x4, fixed_abs, tag = 'smem constant byte address 0x4 - core index']
  #allocation1 [shape = 'u32[144,128]{1,0:T(1,128)}', space=vmem, size = 0x12000, scoped, tag = 'internal scratch']
  %s0 = inlined_call_operand.vmem [shape: f32[2,32,256], index: 0, kind: input, shape index: {}]
  %s1 = inlined_call_operand.vmem [shape: f32[8,32], index: 1, kind: input, shape index: {}]
  %s2 = inlined_call_operand.vmem [shape: f32[8,1], index: 2, kind: input, shape index: {}]
  %s3 = inlined_call_operand.vmem [shape: f32[2,8,256], index: 3, kind: output, shape index: {}]
  %s4 = sld [smem:[#allocation0]]
  $region45: #{network_stem_forward.1} parent=0
    _
  %s6 = ssub.s32 1, %s4
  %s7 = scalar_select 0, %s6, %s4
  loop: start=0, step=1, limit=4
  $region2: #{network_stem_forward.1} parent=0 // loop_pre_header
    _
  $region3: #{network_stem_forward.1} parent=0 // loop_header
    %s9 = sphi 0, %s13
    %p10 = scmp.ge.s32.totalorder %s9, 4
    %s19 = sphi 0, %s21
    %s22 = sphi 0, %s19
    %s23 = sphi 0, %s22
    %s39 = sphi 0, %s23
    %s43 = sphi 0, %s43
    %s45 = sphi 0, %s43
    %s46 = sphi 0, %s45
    %s60 = sphi 0, %s46
    %s64 = sphi 0, %s64
    %s66 = sphi 0, %s64
    %s67 = sphi 0, %s66
    %s81 = sphi 0, %s67
    %s87 = sphi 0, %s89
    %s90 = sphi 0, %s87
    %s91 = sphi 0, %s90
    %s107 = sphi 0, %s91
  $region4: #{network_stem_forward.1} parent=0 // loop_header_branch
    %12 = sbr.rel (%p10) target = $region8
  $region5: #{network_stem_forward.1} parent=0 // loop_body
    %s14 = ssub.s32 %s9, 1
    %s15 = ssub.s32 %s9, 2
    %s16 = sadd.s32 %s9, 1
    %s17 = ssub.s32 %s9, %s16
    %p18 = scmp.eq.s32.totalorder %s17, 0
    %s20 = sadd.s32 %s19, 1
    %s21 = scalar_select %p18, %s19, %s20
    %p24 = pneg %p18
    %p25 = scmp.eq.s32.totalorder %s9, 1
    %p26 = por %p24, %p25
    %p27 = scmp.ne.s32.totalorder %s19, %s22
    %p28 = scmp.eq.s32.totalorder %s9, 0
    %p29 = por %p27, %p28
    %p30 = scmp.ne.s32.totalorder %s19, %s22
    %p31 = scmp.eq.s32.totalorder %s14, 1
    %p32 = por %p30, %p31
    %p33 = scmp.ne.s32.totalorder %s22, %s23
    %p34 = scmp.eq.s32.totalorder %s14, 0
    %p35 = por %p33, %p34
    %p36 = scmp.ne.s32.totalorder %s22, %s23
    %p37 = scmp.eq.s32.totalorder %s15, 1
    %p38 = por %p36, %p37
    %p40 = scmp.ne.s32.totalorder %s23, %s39
    %p41 = scmp.eq.s32.totalorder %s15, 0
    %p42 = por %p40, %p41
    %s44 = sadd.s32 %s43, 1
    %p47 = scmp.eq.s32.totalorder %s9, 1
    %p48 = scmp.ne.s32.totalorder %s43, %s45
    %p49 = scmp.eq.s32.totalorder %s9, 0
    %p50 = por %p48, %p49
    %p51 = scmp.ne.s32.totalorder %s43, %s45
    %p52 = scmp.eq.s32.totalorder %s14, 1
    %p53 = por %p51, %p52
    %p54 = scmp.ne.s32.totalorder %s45, %s46
    %p55 = scmp.eq.s32.totalorder %s14, 0
    %p56 = por %p54, %p55
    %p57 = scmp.ne.s32.totalorder %s45, %s46
    %p58 = scmp.eq.s32.totalorder %s15, 1
    %p59 = por %p57, %p58
    %p61 = scmp.ne.s32.totalorder %s46, %s60
    %p62 = scmp.eq.s32.totalorder %s15, 0
    %p63 = por %p61, %p62
    %s65 = sadd.s32 %s64, 1
    %p68 = scmp.eq.s32.totalorder %s9, 1
    %p69 = scmp.ne.s32.totalorder %s64, %s66
    %p70 = scmp.eq.s32.totalorder %s9, 0
    %p71 = por %p69, %p70
    %p72 = scmp.ne.s32.totalorder %s64, %s66
    %p73 = scmp.eq.s32.totalorder %s14, 1
    %p74 = por %p72, %p73
    %p75 = scmp.ne.s32.totalorder %s66, %s67
    %p76 = scmp.eq.s32.totalorder %s14, 0
    %p77 = por %p75, %p76
    %p78 = scmp.ne.s32.totalorder %s66, %s67
    %p79 = scmp.eq.s32.totalorder %s15, 1
    %p80 = por %p78, %p79
    %p82 = scmp.ne.s32.totalorder %s67, %s81
    %p83 = scmp.eq.s32.totalorder %s15, 0
    %p84 = por %p82, %p83
    %s85 = ssub.s32 %s9, %s16
    %p86 = scmp.eq.s32.totalorder %s85, 0
    %s88 = sadd.s32 %s87, 1
    %s89 = scalar_select %p86, %s87, %s88
    %p92 = pneg %p86
    %p93 = scmp.eq.s32.totalorder %s9, 1
    %p94 = por %p92, %p93
    %p95 = scmp.ne.s32.totalorder %s87, %s90
    %p96 = scmp.eq.s32.totalorder %s9, 0
    %p97 = por %p95, %p96
    %p98 = scmp.ne.s32.totalorder %s87, %s90
    %p99 = scmp.eq.s32.totalorder %s14, 1
    %p100 = por %p98, %p99
    %p101 = scmp.ne.s32.totalorder %s90, %s91
    %p102 = scmp.eq.s32.totalorder %s14, 0
    %p103 = por %p101, %p102
    %p104 = scmp.ne.s32.totalorder %s90, %s91
    %p105 = scmp.eq.s32.totalorder %s15, 1
    %p106 = por %p104, %p105
    %p108 = scmp.ne.s32.totalorder %s91, %s107
    %p109 = scmp.eq.s32.totalorder %s15, 0
    %p110 = por %p108, %p109
    %p111 = scmp.le.s32.totalorder 1, %s9
    %p112 = scmp.lt.s32.totalorder %s9, 3
    %p113 = pnand %p111, %p112
    %p114 = pneg %p113
    // Predicated region
    $region9: #{network_stem_forward.1} parent=5 // pred_check
      _
    $region10: #{network_stem_forward.1} parent=5 // pred_check_branch
      %116 = sbr.rel (%p113) target = $region12
    $region11: #{network_stem_forward.1} parent=5 // pred_region
      %s117 = ssub.s32 %s9, 1
      // Predicated region
      $region13: #{network_stem_forward.1} parent=11 // pred_check
        %p118 = pneg %p56
      $region14: #{network_stem_forward.1} parent=11 // pred_check_branch
        %120 = sbr.rel (%p118) target = $region16
      $region15: #{network_stem_forward.1} parent=11 // pred_region
        _
      $region16: #{network_stem_forward.1} parent=11 // pred_fallthru
        _
      // Predicated region
      $region17: #{network_stem_forward.1} parent=11 // pred_check
        %p121 = pneg %p77
      $region18: #{network_stem_forward.1} parent=11 // pred_check_branch
        %123 = sbr.rel (%p121) target = $region20
      $region19: #{network_stem_forward.1} parent=11 // pred_region
        _
      $region20: #{network_stem_forward.1} parent=11 // pred_fallthru
        _
    $region12: #{network_stem_forward.1} parent=5 // pred_fallthru
      _
    %p124 = scmp.lt.s32.totalorder %s9, 2
    // Predicated region
    $region21: #{network_stem_forward.1} parent=5 // pred_check
      %p125 = pneg %p124
    $region22: #{network_stem_forward.1} parent=5 // pred_check_branch
      %127 = sbr.rel (%p125) target = $region24
    $region23: #{network_stem_forward.1} parent=5 // pred_region
      // Predicated region
      $region25: #{network_stem_forward.1} parent=23 // pred_check
        %p128 = pneg %p29
      $region26: #{network_stem_forward.1} parent=23 // pred_check_branch
        %130 = sbr.rel (%p128) target = $region28
      $region27: #{network_stem_forward.1} parent=23 // pred_region
        %p131 = scmp.lt.s32.totalorder %s9, 1
        %s132 = scalar_select %p131, %s9, 1
        %s133 = smul.addr %s132, 8
        %s134 = smul.addr %s133, 8
        %s135 = scalar_lea.vmem %s0, %s134
      $region28: #{network_stem_forward.1} parent=23 // pred_fallthru
        _
    $region24: #{network_stem_forward.1} parent=5 // pred_fallthru
      _
    %p136 = scmp.le.s32.totalorder 1, %s9
    %p137 = scmp.lt.s32.totalorder %s9, 3
    %p138 = pnand %p136, %p137
    %p139 = pneg %p138
    // Predicated region
    $region29: #{network_stem_forward.1} parent=5 // pred_check
      _
    $region30: #{network_stem_forward.1} parent=5 // pred_check_branch
      %141 = sbr.rel (%p138) target = $region32
    $region31: #{network_stem_forward.1} parent=5 // pred_region
      %s142 = ssub.s32 %s9, 1
      %p143 = scmp.lt.s32.totalorder %s14, 1
      %s144 = scalar_select %p143, %s14, 1
      %s145 = smul.addr %s144, 8
      %s146 = smul.addr %s145, 8
      %s147 = scalar_lea.vmem %s0, %s146
      %p148 = pneg %p35
      %p149 = pneg %p32
      %p150 = pneg %p56
      %p151 = pneg %p53
      %p152 = pneg %p77
      %p153 = pneg %p74
      %p154 = pneg %p103
      %p155 = pneg %p100
      %p156 = scmp.lt.s32.totalorder %s14, 1
      %s157 = scalar_select %p156, %s14, 1
      %s158 = smul.addr %s157, 2
      %s159 = smul.addr %s158, 8
      %s160 = scalar_lea.vmem %s3, %s159
      %p161 = scmp.lt.s32.totalorder %s14, 1
      %s162 = scalar_select %p161, %s14, 1
      %s163 = smul.addr %s162, 8
      %s164 = smul.addr %s163, 8
      %s165 = scalar_lea.vmem %s0, %s164
      %p166 = scmp.lt.s32.totalorder %s14, 1
      %s167 = scalar_select %p166, %s14, 1
      %s168 = smul.addr %s167, 2
      %s169 = smul.addr %s168, 8
      %s170 = scalar_lea.vmem %s3, %s169
      %v171 = vld [vmem:[%s1] sm:$0xff]
      %v172 = vld [vmem:[%s2] sm:$0xff]
      %v173 = vld [vmem:[%s165] sm:$0xff]
      %v174 = vld [vmem:[%s165 + $0x8] sm:$0xff]
      %v175 = vld [vmem:[%s165 + $0x10] sm:$0xff]
      %v176 = vld [vmem:[%s165 + $0x18] sm:$0xff]
      %v177 = vld [vmem:[%s165 + $0x20] sm:$0xff]
      %v178 = vld [vmem:[%s165 + $0x28] sm:$0xff]
      %v179 = vld [vmem:[%s165 + $0x30] sm:$0xff]
      %v180 = vld [vmem:[%s165 + $0x38] sm:$0xff]
      %182 = vset.pattern.permute.xlu0 0
      %183 = vperm.xlu0 %182, %v172
      %v184 = vpop.permute.xlu0 %183
      %vm186 = vcmask 261120
      %v188 = vsel %vm186, %v171, 0
      %190 = vmatprep.subr.mxu0 0.0
      %191 = vmatpush1.msra.mxu0 0.0
      %192 = vmatprep.subr.mxu0 0.0
      %193 = vmatpush1.msra.mxu0 0.0
      %194 = vmatprep.subr.mxu0 0.0
      %195 = vmatpush1.msra.mxu0 0.0
      %196 = vmatprep.subr.mxu0 0.0
      %197 = vmatpush1.msra.mxu0 0.0
      %198 = vmatprep.subr.mxu0 0.0
      %199 = vmatpush1.msra.mxu0 0.0
      %200 = vmatprep.subr.mxu0 0.0
      %201 = vmatpush1.msra.mxu0 0.0
      %202 = vmatprep.subr.mxu0 0.0
      %203 = vmatpush1.msra.mxu0 0.0
      %204 = vmatprep.subr.mxu0 0.0
      %205 = vmatpush1.msra.mxu0 0.0
      %206 = vmatprep.subr.mxu0 0.0
      %207 = vmatpush1.msra.mxu0 0.0
      %208 = vmatprep.subr.mxu0 0.0
      %209 = vmatpush1.msra.mxu0 0.0
      %210 = vmatprep.subr.mxu0 0.0
      %211 = vmatpush1.msra.mxu0 0.0
      %212 = vmatprep.subr.mxu0 0.0
      %213 = vmatpush1.msra.mxu0 0.0
      %214 = vmatprep.subr.mxu0 %v180
      %215 = vmatpush1.msra.mxu0 %v179
      %216 = vmatprep.subr.mxu0 %v178
      %217 = vmatpush1.msra.mxu0 %v177
      %218 = vmatprep.subr.mxu0 %v176
      %219 = vmatpush1.msra.mxu0 %v175
      %220 = vmatprep.subr.mxu0 %v174
      %221 = vmatpush1.msra.mxu0 %v173
      %222 = vmatprep.subr.mxu0 0.0
      %223 = vmatpush2.msra.mxu0 0.0
      %224 = vmatprep.subr.mxu0 0.0
      %225 = vmatpush2.msra.mxu0 0.0
      %226 = vmatprep.subr.mxu0 0.0
      %227 = vmatpush2.msra.mxu0 0.0
      %228 = vmatprep.subr.mxu0 0.0
      %229 = vmatpush2.msra.mxu0 0.0
      %230 = vmatprep.subr.mxu0 0.0
      %231 = vmatpush2.msra.mxu0 0.0
      %232 = vmatprep.subr.mxu0 0.0
      %233 = vmatpush2.msra.mxu0 0.0
      %234 = vmatprep.subr.mxu0 0.0
      %235 = vmatpush2.msra.mxu0 0.0
      %236 = vmatprep.subr.mxu0 0.0
      %237 = vmatpush2.msra.mxu0 0.0
      %238 = vmatprep.subr.mxu0 0.0
      %239 = vmatpush2.msra.mxu0 0.0
      %240 = vmatprep.subr.mxu0 0.0
      %241 = vmatpush2.msra.mxu0 0.0
      %242 = vmatprep.subr.mxu0 0.0
      %243 = vmatpush2.msra.mxu0 0.0
      %244 = vmatprep.subr.mxu0 0.0
      %245 = vmatpush2.msra.mxu0 0.0
      %246 = vmatprep.subr.mxu0 0.0
      %247 = vmatpush2.msra.mxu0 0.0
      %248 = vmatprep.subr.mxu0 0.0
      %249 = vmatpush2.msra.mxu0 0.0
      %250 = vmatprep.subr.mxu0 0.0
      %251 = vmatpush2.msra.mxu0 0.0
      %252 = vmatprep.subr.mxu0 0.0
      %253 = vmatpush2.msra.mxu0 0.0
      %254 = vmatprep.mubr.f32.mxu0 0.0
      %255 = vmatmul.mubr.f32.gmra.mxu0 %v188
      %v256 = vpop.f32.mrf.mxu0
      %v257 = vadd.f32 %v184, %v256
      %v258 = vpop.f32.mrf.mxu0
      %v259 = vadd.f32 %v184, %v258
      %260 = vdwg.mxu0
      %261 = vst [vmem:[%s170] sm:$0xff] %v257
      %262 = vst [vmem:[%s170 + $0x8] sm:$0xff] %v259
      %p263 = scmp.lt.s32.totalorder %s14, 1
      %s264 = scalar_select %p263, %s14, 1
      %s265 = smul.addr %s264, 2
      %s266 = smul.addr %s265, 8
      %s267 = scalar_lea.vmem %s3, %s266
      // Predicated region
      $region33: #{network_stem_forward.1} parent=31 // pred_check
        %p268 = pneg %p100
      $region34: #{network_stem_forward.1} parent=31 // pred_check_branch
        %270 = sbr.rel (%p268) target = $region36
      $region35: #{network_stem_forward.1} parent=31 // pred_region
        _
      $region36: #{network_stem_forward.1} parent=31 // pred_fallthru
        _
    $region32: #{network_stem_forward.1} parent=5 // pred_fallthru
      _
    %p271 = scmp.le.s32.totalorder 2, %s9
    // Predicated region
    $region37: #{network_stem_forward.1} parent=5 // pred_check
      %p272 = pneg %p271
    $region38: #{network_stem_forward.1} parent=5 // pred_check_branch
      %274 = sbr.rel (%p272) target = $region40
    $region39: #{network_stem_forward.1} parent=5 // pred_region
      %s275 = ssub.s32 %s9, 2
      // Predicated region
      $region41: #{network_stem_forward.1} parent=39 // pred_check
        %p276 = pneg %p106
      $region42: #{network_stem_forward.1} parent=39 // pred_check_branch
        %278 = sbr.rel (%p276) target = $region44
      $region43: #{network_stem_forward.1} parent=39 // pred_region
        %p279 = scmp.lt.s32.totalorder %s15, 1
        %s280 = scalar_select %p279, %s15, 1
        %s281 = smul.addr %s280, 2
        %s282 = smul.addr %s281, 8
        %s283 = scalar_lea.vmem %s3, %s282
      $region44: #{network_stem_forward.1} parent=39 // pred_fallthru
        _
    $region40: #{network_stem_forward.1} parent=5 // pred_fallthru
      _
  $region6: #{network_stem_forward.1} parent=0 // loop_footer
    %s13 = sadd.s32 1, %s9
  $region7: #{network_stem_forward.1} parent=0 // loop_footer_branch
    %8 = sbr.rel target = $region3
  $region8: #{network_stem_forward.1} parent=0 // loop_exit
    _

</llo_original>
